<compile_context>
chip_gen: v6e
topology: v6e:2x2x1
jax: 0.10.0
libtpu: 0.0.40
codegen_flags: <defaults>
</compile_context>

<pallas_src>
import functools
import math

import jax
import jax.numpy as jnp
from jax.experimental import pallas as pl
from jax.experimental.pallas import tpu as pltpu


def _apply_activation(y, activation):
    if activation is None:
        return y
    if activation == "relu":
        return jnp.maximum(y, 0.0)
    if activation == "sigmoid":
        return jax.nn.sigmoid(y)
    raise ValueError(f"unsupported activation: {activation}")


def _round_up(v, m):
    return ((v + m - 1) // m) * m


def _choose_row_tile(n, num_ops, f_in, f_pad, budget_bytes=24 * 1024 * 1024):
    """Largest node-row tile TN (a divisor of N, 8-aligned, preferring
    128-aligned for the MXU) whose double-buffered VMEM footprint fits the
    budget.  Budget is conservative so the same tiling works on v7x (64 MiB
    physical VMEM) as well as v5e/v6e."""
    fixed = 2 * 4 * (n * f_in + num_ops * f_in * f_pad + f_pad)   # x, W, bias
    per_row = 2 * 4 * (num_ops * n + f_pad)                        # gso tile, out tile
    max_tn = (budget_bytes - fixed) // per_row
    if n <= 256 or max_tn >= n:
        return n
    candidates = [t for t in range(8, n, 8) if n % t == 0 and t <= max_tn]
    if not candidates:
        return n  # no aligned divisor fits the budget; fall back to full rows
    aligned = [t for t in candidates if t % 128 == 0]
    return max(aligned) if aligned else max(candidates)


def _gcn_layer_kernel(gso_ref, x_ref, w_ref, b_ref, out_ref, *,
                      activation, num_operators, f_out, xw_first):
    # Per grid step (batch b, node-row tile ni):
    #   gso_ref: (1, O, TN, N)   row tile of every operator's shift matrix
    #   x_ref:   (1, N, F_in)    full node features of this batch (resident)
    #   w_ref:   (O, F_in, Fp)   filter taps, F_out zero-padded to Fp (128-mult)
    #   b_ref:   (1, Fp)         bias, zero-padded
    #   out_ref: (1, TN, Fp)
    tn, fp = out_ref.shape[1], out_ref.shape[2]
    x = x_ref[0]                                   # (N, F_in)

    acc_width = f_out if xw_first else fp
    acc = jnp.zeros((tn, acc_width), jnp.float32)

    # O is small and static: unrolled at trace time -> no per-operator grid
    # steps and no VMEM accumulator round-trips.
    for o in range(num_operators):
        g = gso_ref[0, o]                          # (TN, N)
        w = w_ref[o]                               # (F_in, Fp)
        if xw_first:
            # F_out < F_in: contract the feature axis first so the dominant
            # O(TN*N) matmul has width F_out instead of F_in.
            xw = jnp.dot(x, w[:, :f_out], preferred_element_type=jnp.float32)   # (N, F_out)
            acc = acc + jnp.dot(g, xw, preferred_element_type=jnp.float32)      # (TN, F_out)
        else:
            gx = jnp.dot(g, x, preferred_element_type=jnp.float32)              # (TN, F_in)
            acc = acc + jnp.dot(gx, w, preferred_element_type=jnp.float32)      # (TN, Fp)

    b = b_ref[...]                                 # (1, Fp)
    if xw_first:
        y = _apply_activation(acc + b[:, :f_out], activation)                   # (TN, F_out)
        if fp > f_out:
            # Widen to the lane-dense padded width with a tiny matmul against a
            # zero-padded identity (avoids masked partial stores and unaligned
            # lane concatenation).
            row = jax.lax.broadcasted_iota(jnp.int32, (f_out, fp), 0)
            col = jax.lax.broadcasted_iota(jnp.int32, (f_out, fp), 1)
            eye_pad = (row == col).astype(jnp.float32)                           # (F_out, Fp)
            y = jnp.dot(y, eye_pad, preferred_element_type=jnp.float32)          # (TN, Fp)
    else:
        y = _apply_activation(acc + b, activation)                                # (TN, Fp)

    out_ref[0] = y.astype(out_ref.dtype)           # single full-width lane-dense store


def gcn_layer(x, gso, w, b, activation):
    """One GCNLayer forward: x (B,N,F_in), gso (B,O,N,N) -> (B,N,F_out)."""
    B, N, F_in = x.shape
    O = gso.shape[1]
    F_out = w.shape[-1]
    Fp = _round_up(F_out, 128)

    # Zero-pad the output-feature axis of W / bias for lane-dense output stores.
    if Fp != F_out:
        w_p = jnp.zeros((O, F_in, Fp), jnp.float32).at[:, :, :F_out].set(w)
        b_p = jnp.zeros((Fp,), jnp.float32).at[:F_out].set(b)
    else:
        w_p, b_p = w.astype(jnp.float32), b.astype(jnp.float32)
    b2d = b_p.reshape(1, Fp)

    TN = _choose_row_tile(N, O, F_in, Fp)
    NT = N // TN

    xw_first = F_out < F_in
    kernel = functools.partial(
        _gcn_layer_kernel,
        activation=activation,
        num_operators=O,
        f_out=F_out,
        xw_first=xw_first,
    )

    out_p = pl.pallas_call(
        kernel,
        out_shape=jax.ShapeDtypeStruct((B, N, Fp), jnp.float32),
        grid_spec=pltpu.PrefetchScalarGridSpec(
            num_scalar_prefetch=0,
            grid=(B, NT),
            in_specs=[
                pl.BlockSpec((1, O, TN, N), lambda bi, ni: (bi, 0, ni, 0)),   # gso row tile
                pl.BlockSpec((1, N, F_in), lambda bi, ni: (bi, 0, 0)),        # x (resident per batch)
                pl.BlockSpec((O, F_in, Fp), lambda bi, ni: (0, 0, 0)),        # W (padded)
                pl.BlockSpec((1, Fp), lambda bi, ni: (0, 0)),                 # bias (padded)
            ],
            out_specs=pl.BlockSpec((1, TN, Fp), lambda bi, ni: (bi, ni, 0)),
        ),
        compiler_params=pltpu.CompilerParams(
            # No reduction grid axis (operator loop is in-body): both axes are
            # parallel so v7x can split rows across its 2 TensorCores.
            dimension_semantics=("parallel", "parallel"),
            # Above the 16/32 MiB scoped defaults, below v7x's 64 MiB physical;
            # actual usage is capped ~24 MiB by the tile-size budget.
            vmem_limit_bytes=48 * 1024 * 1024,
        ),
    )(gso, x, w_p, b2d)

    return out_p[:, :, :F_out] if Fp != F_out else out_p


def init_gcn_params(key, num_features, num_operators, biasinit=0.0):
    """'normal' weightinit matching the PyTorch module shapes (f32 instead of f64)."""
    params = []
    num_layers = len(num_features) - 1
    keys = jax.random.split(key, num_layers)
    for i in range(num_layers):
        f_in, f_out = num_features[i], num_features[i + 1]
        w = jax.random.normal(keys[i], (num_operators, f_in, f_out),
                              dtype=jnp.float32) / math.sqrt(f_in + f_out)
        bias = jnp.ones((f_out,), dtype=jnp.float32) * biasinit
        params.append((w, bias))
    return params


def gcn_forward(x, gso, params, activations):
    """Full GCN forward (recomb=False)."""
    x_out = x
    for (w, b), act in zip(params, activations):
        x_out = gcn_layer(x_out, gso, w, b, act)
    return x_out


def gcn_forward_ref(x, gso, params, activations):
    """Pure-JAX reference for validation."""
    x_out = x
    for (w, b), act in zip(params, activations):
        t = jnp.einsum("bonm,bmf->bonf", gso, x_out)
        t = jnp.einsum("bonf,ofg->bong", t, w)
        y = t.sum(axis=1) + b
        x_out = _apply_activation(y, act)
    return x_out


if __name__ == "__main__":
    # Small synthetic config: 2 layers, features [4, 32, 8], 3 operators.
    # Layer 1 exercises the gx-first path, layer 2 the xw-first (F_out<F_in) path.
    B, N = 2, 16
    num_features = [4, 32, 8]
    num_operators = 3
    activations = ["relu", None]

    key = jax.random.PRNGKey(0)
    kx, kg, kp = jax.random.split(key, 3)

    x = jax.random.normal(kx, (B, N, num_features[0]), dtype=jnp.float32)
    gso = jax.random.normal(kg, (B, num_operators, N, N), dtype=jnp.float32)
    params = init_gcn_params(kp, num_features, num_operators, biasinit=0.0)

    out = gcn_forward(x, gso, params, activations)
    out = jax.block_until_ready(out)

    ref = gcn_forward_ref(x, gso, params, activations)
    assert out.shape == (B, N, num_features[-1])
    assert jnp.allclose(out, ref, atol=1e-3, rtol=1e-4), "mismatch vs reference"

    print("KERNEL_OK")
</pallas_src>

<mosaic_0001>
module attributes {stable_mosaic.version = 11 : i64} {
  func.func @_gcn_layer_kernel(%arg0: i32, %arg1: i32, %arg2: memref<1x3x16x16xf32, #tpu.memory_space<vmem>>, %arg3: memref<1x16x4xf32, #tpu.memory_space<vmem>>, %arg4: memref<3x4x128xf32, #tpu.memory_space<vmem>>, %arg5: memref<1x128xf32, #tpu.memory_space<vmem>>, %arg6: memref<1x16x128xf32, #tpu.memory_space<vmem>>) attributes {dimension_semantics = [#tpu.dimension_semantics<parallel>, #tpu.dimension_semantics<parallel>], iteration_bounds = array<i64: 2, 1>, scalar_prefetch = 0 : i64, scratch_operands = 0 : i64, tpu.core_type = #tpu.core_type<tc>, window_params = [{transform_indices = @transform_0, window_bounds = array<i64: 1, 3, 16, 16>}, {transform_indices = @transform_1, window_bounds = array<i64: 1, 16, 4>}, {pipeline_mode = #tpu.pipeline_mode<synchronous>, transform_indices = @transform_2, window_bounds = array<i64: 3, 4, 128>}, {pipeline_mode = #tpu.pipeline_mode<synchronous>, transform_indices = @transform_3, window_bounds = array<i64: 1, 128>}, {transform_indices = @transform_4, window_bounds = array<i64: 1, 16, 128>}]} {
    %c0 = arith.constant 0 : index
    %c0_0 = arith.constant 0 : index
    %c0_1 = arith.constant 0 : index
    %0 = vector.load %arg3[%c0, %c0_0, %c0_1] : memref<1x16x4xf32, #tpu.memory_space<vmem>>, vector<1x16x4xf32>
    %1 = vector.shape_cast %0 : vector<1x16x4xf32> to vector<16x4xf32>
    %cst = arith.constant 0.000000e+00 : f32
    %2 = vector.broadcast %cst : f32 to vector<16x128xf32>
    %c0_2 = arith.constant 0 : index
    %c0_3 = arith.constant 0 : index
    %c0_4 = arith.constant 0 : index
    %c0_5 = arith.constant 0 : index
    %3 = vector.load %arg2[%c0_2, %c0_3, %c0_4, %c0_5] : memref<1x3x16x16xf32, #tpu.memory_space<vmem>>, vector<1x1x16x16xf32>
    %4 = vector.shape_cast %3 : vector<1x1x16x16xf32> to vector<16x16xf32>
    %c0_6 = arith.constant 0 : index
    %c0_7 = arith.constant 0 : index
    %c0_8 = arith.constant 0 : index
    %5 = vector.load %arg4[%c0_6, %c0_7, %c0_8] : memref<3x4x128xf32, #tpu.memory_space<vmem>>, vector<1x4x128xf32>
    %6 = vector.shape_cast %5 : vector<1x4x128xf32> to vector<4x128xf32>
    %cst_9 = arith.constant dense<0.000000e+00> : vector<16x4xf32>
    %7 = tpu.matmul %4, %1, %cst_9 {dimension_numbers = #tpu.dot_dimension_numbers<[1], [0], [0], [1], [0, 0, 1, 1], [], []>} : vector<16x16xf32>, vector<16x4xf32>, vector<16x4xf32> -> vector<16x4xf32>
    %cst_10 = arith.constant dense<0.000000e+00> : vector<16x128xf32>
    %8 = tpu.matmul %7, %6, %cst_10 {dimension_numbers = #tpu.dot_dimension_numbers<[1], [0], [0], [1], [0, 0, 1, 1], [], []>} : vector<16x4xf32>, vector<4x128xf32>, vector<16x128xf32> -> vector<16x128xf32>
    %9 = arith.addf %2, %8 : vector<16x128xf32>
    %c0_11 = arith.constant 0 : index
    %c1 = arith.constant 1 : index
    %c0_12 = arith.constant 0 : index
    %c0_13 = arith.constant 0 : index
    %10 = vector.load %arg2[%c0_11, %c1, %c0_12, %c0_13] : memref<1x3x16x16xf32, #tpu.memory_space<vmem>>, vector<1x1x16x16xf32>
    %11 = vector.shape_cast %10 : vector<1x1x16x16xf32> to vector<16x16xf32>
    %c1_14 = arith.constant 1 : index
    %c0_15 = arith.constant 0 : index
    %c0_16 = arith.constant 0 : index
    %12 = vector.load %arg4[%c1_14, %c0_15, %c0_16] : memref<3x4x128xf32, #tpu.memory_space<vmem>>, vector<1x4x128xf32>
    %13 = vector.shape_cast %12 : vector<1x4x128xf32> to vector<4x128xf32>
    %cst_17 = arith.constant dense<0.000000e+00> : vector<16x4xf32>
    %14 = tpu.matmul %11, %1, %cst_17 {dimension_numbers = #tpu.dot_dimension_numbers<[1], [0], [0], [1], [0, 0, 1, 1], [], []>} : vector<16x16xf32>, vector<16x4xf32>, vector<16x4xf32> -> vector<16x4xf32>
    %cst_18 = arith.constant dense<0.000000e+00> : vector<16x128xf32>
    %15 = tpu.matmul %14, %13, %cst_18 {dimension_numbers = #tpu.dot_dimension_numbers<[1], [0], [0], [1], [0, 0, 1, 1], [], []>} : vector<16x4xf32>, vector<4x128xf32>, vector<16x128xf32> -> vector<16x128xf32>
    %16 = arith.addf %9, %15 : vector<16x128xf32>
    %c0_19 = arith.constant 0 : index
    %c2 = arith.constant 2 : index
    %c0_20 = arith.constant 0 : index
    %c0_21 = arith.constant 0 : index
    %17 = vector.load %arg2[%c0_19, %c2, %c0_20, %c0_21] : memref<1x3x16x16xf32, #tpu.memory_space<vmem>>, vector<1x1x16x16xf32>
    %18 = vector.shape_cast %17 : vector<1x1x16x16xf32> to vector<16x16xf32>
    %c2_22 = arith.constant 2 : index
    %c0_23 = arith.constant 0 : index
    %c0_24 = arith.constant 0 : index
    %19 = vector.load %arg4[%c2_22, %c0_23, %c0_24] : memref<3x4x128xf32, #tpu.memory_space<vmem>>, vector<1x4x128xf32>
    %20 = vector.shape_cast %19 : vector<1x4x128xf32> to vector<4x128xf32>
    %cst_25 = arith.constant dense<0.000000e+00> : vector<16x4xf32>
    %21 = tpu.matmul %18, %1, %cst_25 {dimension_numbers = #tpu.dot_dimension_numbers<[1], [0], [0], [1], [0, 0, 1, 1], [], []>} : vector<16x16xf32>, vector<16x4xf32>, vector<16x4xf32> -> vector<16x4xf32>
    %cst_26 = arith.constant dense<0.000000e+00> : vector<16x128xf32>
    %22 = tpu.matmul %21, %20, %cst_26 {dimension_numbers = #tpu.dot_dimension_numbers<[1], [0], [0], [1], [0, 0, 1, 1], [], []>} : vector<16x4xf32>, vector<4x128xf32>, vector<16x128xf32> -> vector<16x128xf32>
    %23 = arith.addf %16, %22 : vector<16x128xf32>
    %c0_27 = arith.constant 0 : index
    %c0_28 = arith.constant 0 : index
    %24 = vector.load %arg5[%c0_27, %c0_28] : memref<1x128xf32, #tpu.memory_space<vmem>>, vector<1x128xf32>
    %25 = vector.broadcast %24 : vector<1x128xf32> to vector<16x128xf32>
    %26 = arith.addf %23, %25 : vector<16x128xf32>
    %cst_29 = arith.constant 0.000000e+00 : f32
    %27 = vector.broadcast %cst_29 : f32 to vector<16x128xf32>
    %28 = arith.maximumf %26, %27 : vector<16x128xf32>
    %c0_30 = arith.constant 0 : index
    %c0_31 = arith.constant 0 : index
    %c0_32 = arith.constant 0 : index
    %29 = vector.load %arg6[%c0_30, %c0_31, %c0_32] : memref<1x16x128xf32, #tpu.memory_space<vmem>>, vector<1x16x128xf32>
    %30 = vector.shape_cast %29 : vector<1x16x128xf32> to vector<16x128xf32>
    %31 = vector.shape_cast %28 : vector<16x128xf32> to vector<1x16x128xf32>
    tpu.vector_store %arg6[%c0_30, %c0_31, %c0_32], %31 {strides = array<i32>} : memref<1x16x128xf32, #tpu.memory_space<vmem>>, vector<1x16x128xf32>,
    return
  }
  func.func @transform_0(%arg0: i32, %arg1: i32) -> (i32, i32, i32, i32) {
    %c0_i32 = arith.constant 0 : i32
    %c0_i32_0 = arith.constant 0 : i32
    %c0_i32_1 = arith.constant 0 : i32
    return %arg0, %c0_i32, %arg1, %c0_i32_0 : i32, i32, i32, i32
  }
  func.func @transform_1(%arg0: i32, %arg1: i32) -> (i32, i32, i32) {
    %c0_i32 = arith.constant 0 : i32
    %c0_i32_0 = arith.constant 0 : i32
    %c0_i32_1 = arith.constant 0 : i32
    return %arg0, %c0_i32, %c0_i32_0 : i32, i32, i32
  }
  func.func @transform_2(%arg0: i32, %arg1: i32) -> (i32, i32, i32) {
    %c0_i32 = arith.constant 0 : i32
    %c0_i32_0 = arith.constant 0 : i32
    %c0_i32_1 = arith.constant 0 : i32
    %c0_i32_2 = arith.constant 0 : i32
    return %c0_i32, %c0_i32_0, %c0_i32_1 : i32, i32, i32
  }
  func.func @transform_3(%arg0: i32, %arg1: i32) -> (i32, i32) {
    %c0_i32 = arith.constant 0 : i32
    %c0_i32_0 = arith.constant 0 : i32
    %c0_i32_1 = arith.constant 0 : i32
    return %c0_i32, %c0_i32_0 : i32, i32
  }
  func.func @transform_4(%arg0: i32, %arg1: i32) -> (i32, i32, i32) {
    %c0_i32 = arith.constant 0 : i32
    %c0_i32_0 = arith.constant 0 : i32
    return %arg0, %arg1, %c0_i32 : i32, i32, i32
  }
}

</mosaic_0001>

<llo_original>
// kernel: tpu_custom_call.1
$region0: #{tpu_custom_call.1}
  #allocation0 [shape = 'u32[]', space=smem, size = 0x4, offset = 0x4, fixed_abs, tag = 'smem constant byte address 0x4 - core index']
  #allocation1 [shape = 'u32[144,128]{1,0:T(1,128)}', space=vmem, size = 0x12000, scoped, tag = 'internal scratch']
  %s0 = inlined_call_operand.hbm [shape: f32[2,3,16,16], index: 0, kind: input, shape index: {}]
  %s1 = inlined_call_operand.vmem [shape: f32[2,16,4], index: 1, kind: input, shape index: {}]
  %s2 = inlined_call_operand.vmem [shape: f32[3,4,128], index: 2, kind: input, shape index: {}]
  %s3 = inlined_call_operand.vmem [shape: f32[1,128], index: 3, kind: input, shape index: {}]
  %s4 = inlined_call_operand.hbm [shape: f32[2,16,128], index: 4, kind: output, shape index: {}]
  %s5 = sld [smem:[#allocation0]]
  $region53: #{tpu_custom_call.1} parent=0
    _
  %s7 = ssub.s32 1, %s5
  %s8 = scalar_select 0, %s7, %s5
  $region1: #{tpu_custom_call.1} parent=0
    #allocation2 [shape = 'u8[49152]{0}', space=vmem, size = 0xc000, scoped, tag = 'input window, operand 0']
    #allocation3 [shape = 's32[2]{0}', space=sflag, size = 0x8, scoped, tag = 'scoped memory for tpu_custom_call.1']
    #allocation4 [shape = 's32[2]{0}', space=sflag, size = 0x8, scoped, tag = 'scoped memory for tpu_custom_call.1']
    #allocation5 [shape = 'u8[16384]{0}', space=vmem, size = 0x4000, scoped, tag = 'output window, operand 0']
    %9 = vsyncpa [#allocation3], 0
    %s10 = scalar_lea.sflag [#allocation3], 1
    %11 = vsyncpa %s10, 0
    %12 = vsyncpa [#allocation4], 0
    %s13 = scalar_lea.sflag [#allocation4], 1
    %14 = vsyncpa %s13, 0
    loop: start=0, step=1, limit=4
    $region2: #{tpu_custom_call.1} parent=1 // loop_pre_header
      _
    $region3: #{tpu_custom_call.1} parent=1 // loop_header
      %s16 = sphi 0, %s20
      %p17 = scmp.ge.s32.totalorder %s16, 4
      %s23 = sphi 0, %s35
      %s24 = sphi 0, %s31
      %s25 = sphi 0, %s23
      %s26 = sphi 0, %s24
      %s27 = sphi 0, %s25
      %s28 = sphi 0, %s26
      %s40 = sphi 0, %s42
      %s43 = sphi 0, %s40
      %s44 = sphi 0, %s43
      %s60 = sphi 0, %s44
      %s66 = sphi 0, %s68
      %s69 = sphi 0, %s66
      %s70 = sphi 0, %s69
      %s86 = sphi 0, %s70
      %s90 = sphi 0, %s90
      %s92 = sphi 0, %s90
      %s93 = sphi 0, %s92
      %s107 = sphi 0, %s93
      %s111 = sphi 0, %s111
      %s113 = sphi 0, %s111
      %s114 = sphi 0, %s113
      %s128 = sphi 0, %s114
      %s136 = sphi 0, %s138
      %s139 = sphi 0, %s136
      %s140 = sphi 0, %s139
      %s156 = sphi 0, %s140
    $region4: #{tpu_custom_call.1} parent=1 // loop_header_branch
      %19 = sbr.rel (%p17) target = $region8
    $region5: #{tpu_custom_call.1} parent=1 // loop_body
      %s21 = ssub.s32 %s16, 1
      %s22 = ssub.s32 %s16, 2
      %s29 = sadd.s32 1, %s24
      %p30 = scmp.ge.s32.totalorder %s29, 1
      %s31 = scalar_select %p30, 0, %s29
      %s32 = sadd.s32 1, %s23
      %s33 = scalar_select %p30, %s32, %s23
      %p34 = scmp.ge.s32.totalorder %s33, 2
      %s35 = scalar_select %p34, 0, %s33
      %s36 = ssub.s32 %s23, %s35
      %s37 = ssub.s32 %s24, %s31
      %s38 = sor.u32 %s36, %s37
      %p39 = scmp.eq.s32.totalorder %s38, 0
      %s41 = sadd.s32 %s40, 1
      %s42 = scalar_select %p39, %s40, %s41
      %p45 = pneg %p39
      %p46 = scmp.eq.s32.totalorder %s16, 1
      %p47 = por %p45, %p46
      %p48 = scmp.ne.s32.totalorder %s40, %s43
      %p49 = scmp.eq.s32.totalorder %s16, 0
      %p50 = por %p48, %p49
      %p51 = scmp.ne.s32.totalorder %s40, %s43
      %p52 = scmp.eq.s32.totalorder %s21, 1
      %p53 = por %p51, %p52
      %p54 = scmp.ne.s32.totalorder %s43, %s44
      %p55 = scmp.eq.s32.totalorder %s21, 0
      %p56 = por %p54, %p55
      %p57 = scmp.ne.s32.totalorder %s43, %s44
      %p58 = scmp.eq.s32.totalorder %s22, 1
      %p59 = por %p57, %p58
      %p61 = scmp.ne.s32.totalorder %s44, %s60
      %p62 = scmp.eq.s32.totalorder %s22, 0
      %p63 = por %p61, %p62
      %s64 = ssub.s32 %s23, %s35
      %p65 = scmp.eq.s32.totalorder %s64, 0
      %s67 = sadd.s32 %s66, 1
      %s68 = scalar_select %p65, %s66, %s67
      %p71 = pneg %p65
      %p72 = scmp.eq.s32.totalorder %s16, 1
      %p73 = por %p71, %p72
      %p74 = scmp.ne.s32.totalorder %s66, %s69
      %p75 = scmp.eq.s32.totalorder %s16, 0
      %p76 = por %p74, %p75
      %p77 = scmp.ne.s32.totalorder %s66, %s69
      %p78 = scmp.eq.s32.totalorder %s21, 1
      %p79 = por %p77, %p78
      %p80 = scmp.ne.s32.totalorder %s69, %s70
      %p81 = scmp.eq.s32.totalorder %s21, 0
      %p82 = por %p80, %p81
      %p83 = scmp.ne.s32.totalorder %s69, %s70
      %p84 = scmp.eq.s32.totalorder %s22, 1
      %p85 = por %p83, %p84
      %p87 = scmp.ne.s32.totalorder %s70, %s86
      %p88 = scmp.eq.s32.totalorder %s22, 0
      %p89 = por %p87, %p88
      %s91 = sadd.s32 %s90, 1
      %p94 = scmp.eq.s32.totalorder %s16, 1
      %p95 = scmp.ne.s32.totalorder %s90, %s92
      %p96 = scmp.eq.s32.totalorder %s16, 0
      %p97 = por %p95, %p96
      %p98 = scmp.ne.s32.totalorder %s90, %s92
      %p99 = scmp.eq.s32.totalorder %s21, 1
      %p100 = por %p98, %p99
      %p101 = scmp.ne.s32.totalorder %s92, %s93
      %p102 = scmp.eq.s32.totalorder %s21, 0
      %p103 = por %p101, %p102
      %p104 = scmp.ne.s32.totalorder %s92, %s93
      %p105 = scmp.eq.s32.totalorder %s22, 1
      %p106 = por %p104, %p105
      %p108 = scmp.ne.s32.totalorder %s93, %s107
      %p109 = scmp.eq.s32.totalorder %s22, 0
      %p110 = por %p108, %p109
      %s112 = sadd.s32 %s111, 1
      %p115 = scmp.eq.s32.totalorder %s16, 1
      %p116 = scmp.ne.s32.totalorder %s111, %s113
      %p117 = scmp.eq.s32.totalorder %s16, 0
      %p118 = por %p116, %p117
      %p119 = scmp.ne.s32.totalorder %s111, %s113
      %p120 = scmp.eq.s32.totalorder %s21, 1
      %p121 = por %p119, %p120
      %p122 = scmp.ne.s32.totalorder %s113, %s114
      %p123 = scmp.eq.s32.totalorder %s21, 0
      %p124 = por %p122, %p123
      %p125 = scmp.ne.s32.totalorder %s113, %s114
      %p126 = scmp.eq.s32.totalorder %s22, 1
      %p127 = por %p125, %p126
      %p129 = scmp.ne.s32.totalorder %s114, %s128
      %p130 = scmp.eq.s32.totalorder %s22, 0
      %p131 = por %p129, %p130
      %s132 = ssub.s32 %s23, %s35
      %s133 = ssub.s32 %s24, %s31
      %s134 = sor.u32 %s132, %s133
      %p135 = scmp.eq.s32.totalorder %s134, 0
      %s137 = sadd.s32 %s136, 1
      %s138 = scalar_select %p135, %s136, %s137
      %p141 = pneg %p135
      %p142 = scmp.eq.s32.totalorder %s16, 1
      %p143 = por %p141, %p142
      %p144 = scmp.ne.s32.totalorder %s136, %s139
      %p145 = scmp.eq.s32.totalorder %s16, 0
      %p146 = por %p144, %p145
      %p147 = scmp.ne.s32.totalorder %s136, %s139
      %p148 = scmp.eq.s32.totalorder %s21, 1
      %p149 = por %p147, %p148
      %p150 = scmp.ne.s32.totalorder %s139, %s140
      %p151 = scmp.eq.s32.totalorder %s21, 0
      %p152 = por %p150, %p151
      %p153 = scmp.ne.s32.totalorder %s139, %s140
      %p154 = scmp.eq.s32.totalorder %s22, 1
      %p155 = por %p153, %p154
      %p157 = scmp.ne.s32.totalorder %s140, %s156
      %p158 = scmp.eq.s32.totalorder %s22, 0
      %p159 = por %p157, %p158
      %p160 = scmp.le.s32.totalorder 1, %s16
      %p161 = scmp.lt.s32.totalorder %s16, 3
      %p162 = pnand %p160, %p161
      %p163 = pneg %p162
      // Predicated region
      $region9: #{tpu_custom_call.1} parent=5 // pred_check
        _
      $region10: #{tpu_custom_call.1} parent=5 // pred_check_branch
        %165 = sbr.rel (%p162) target = $region12
      $region11: #{tpu_custom_call.1} parent=5 // pred_region
        %s166 = ssub.s32 %s16, 1
        // Predicated region
        $region13: #{tpu_custom_call.1} parent=11 // pred_check
          %p167 = pneg %p103
        $region14: #{tpu_custom_call.1} parent=11 // pred_check_branch
          %169 = sbr.rel (%p167) target = $region16
        $region15: #{tpu_custom_call.1} parent=11 // pred_region
          _
        $region16: #{tpu_custom_call.1} parent=11 // pred_fallthru
          _
        // Predicated region
        $region17: #{tpu_custom_call.1} parent=11 // pred_check
          %p170 = pneg %p124
        $region18: #{tpu_custom_call.1} parent=11 // pred_check_branch
          %172 = sbr.rel (%p170) target = $region20
        $region19: #{tpu_custom_call.1} parent=11 // pred_region
          _
        $region20: #{tpu_custom_call.1} parent=11 // pred_fallthru
          _
      $region12: #{tpu_custom_call.1} parent=5 // pred_fallthru
        _
      %p173 = scmp.lt.s32.totalorder %s16, 2
      // Predicated region
      $region21: #{tpu_custom_call.1} parent=5 // pred_check
        %p174 = pneg %p173
      $region22: #{tpu_custom_call.1} parent=5 // pred_check_branch
        %176 = sbr.rel (%p174) target = $region24
      $region23: #{tpu_custom_call.1} parent=5 // pred_region
        // Predicated region
        $region25: #{tpu_custom_call.1} parent=23 // pred_check
          %p177 = pneg %p50
        $region26: #{tpu_custom_call.1} parent=23 // pred_check_branch
          %179 = sbr.rel (%p177) target = $region28
        $region27: #{tpu_custom_call.1} parent=23 // pred_region
          %s180 = sand.u32 %s40, 1
          %s181 = scalar_lea.sflag [#allocation3], %s180
          %s182 = sand.u32 %s40, 1
          %s183 = smul.addr %s182, 48
          %s184 = scalar_lea.vmem [#allocation2], %s183
          %s185 = smul.u32 2, %s24
          %s187 = ssub.s32 768, 768
          %188 = vsyncadd %s181, %s187
          %s189 = smul.addr %s23, 6
          %s190 = sadd.s32 %s185, %s189
          %s191 = smul.addr %s190, 128
          %s192 = scalar_lea.hbm %s0, %s191
          %s193 = sshll.u32 %s184, 4
          %s194 = int_to_ptr.vmem [resolvable:$true] %s193
          %199 = dma.hbm_to_vmem [thread:$0]  %s192, 768, %s194, %s181, 128, 128, 8
        $region28: #{tpu_custom_call.1} parent=23 // pred_fallthru
          _
        // Predicated region
        $region29: #{tpu_custom_call.1} parent=23 // pred_check
          %p200 = pneg %p76
        $region30: #{tpu_custom_call.1} parent=23 // pred_check_branch
          %202 = sbr.rel (%p200) target = $region32
        $region31: #{tpu_custom_call.1} parent=23 // pred_region
          %p203 = scmp.lt.s32.totalorder %s23, 1
          %s204 = scalar_select %p203, %s23, 1
          %s205 = smul.addr %s204, 2
          %s206 = smul.addr %s205, 8
          %s207 = scalar_lea.vmem %s1, %s206
        $region32: #{tpu_custom_call.1} parent=23 // pred_fallthru
          _
      $region24: #{tpu_custom_call.1} parent=5 // pred_fallthru
        _
      %p208 = scmp.le.s32.totalorder 1, %s16
      %p209 = scmp.lt.s32.totalorder %s16, 3
      %p210 = pnand %p208, %p209
      %p211 = pneg %p210
      // Predicated region
      $region33: #{tpu_custom_call.1} parent=5 // pred_check
        _
      $region34: #{tpu_custom_call.1} parent=5 // pred_check_branch
        %213 = sbr.rel (%p210) target = $region36
      $region35: #{tpu_custom_call.1} parent=5 // pred_region
        %s214 = ssub.s32 %s16, 1
        %s215 = sand.u32 %s43, 1
        %s216 = scalar_lea.sflag [#allocation3], %s215
        %s217 = sand.u32 %s43, 1
        %s218 = smul.addr %s217, 48
        %s219 = scalar_lea.vmem [#allocation2], %s218
        // Predicated region
        $region37: #{tpu_custom_call.1} parent=35 // pred_check
          %p220 = pneg %p56
        $region38: #{tpu_custom_call.1} parent=35 // pred_check_branch
          %222 = sbr.rel (%p220) target = $region40
        $region39: #{tpu_custom_call.1} parent=35 // pred_region
          %223 = dma.done %s216, 768
        $region40: #{tpu_custom_call.1} parent=35 // pred_fallthru
          _
        %s224 = sand.u32 %s43, 1
        %s225 = scalar_lea.sflag [#allocation3], %s224
        %s226 = sand.u32 %s43, 1
        %s227 = smul.addr %s226, 48
        %s228 = scalar_lea.vmem [#allocation2], %s227
        %p229 = pneg %p56
        %p230 = pneg %p53
        %p231 = scmp.lt.s32.totalorder %s25, 1
        %s232 = scalar_select %p231, %s25, 1
        %s233 = smul.addr %s232, 2
        %s234 = smul.addr %s233, 8
        %s235 = scalar_lea.vmem %s1, %s234
        %p236 = pneg %p82
        %p237 = pneg %p79
        %p238 = pneg %p103
        %p239 = pneg %p100
        %p240 = pneg %p124
        %p241 = pneg %p121
        %p242 = pneg %p152
        %p243 = pneg %p149
        %s244 = sand.u32 %s139, 1
        %s245 = scalar_lea.sflag [#allocation4], %s244
        %s246 = sand.u32 %s139, 1
        %s247 = smul.addr %s246, 16
        %s248 = scalar_lea.vmem [#allocation5], %s247
        %s249 = smul.u32 2, %s26
        %p250 = scmp.lt.s32.totalorder %s25, 1
        %s251 = scalar_select %p250, %s25, 1
        %s252 = smul.addr %s251, 2
        %s253 = smul.addr %s252, 8
        %s254 = scalar_lea.vmem %s1, %s253
        %s255 = smul.u32 2, %s26
        %v256 = vld [vmem:[%s254] sm:$0xff]
        %v257 = vld [vmem:[%s254 + $0x8] sm:$0xff]
        %v258 = vld [vmem:[%s219] sm:$0xff]
        %v259 = vld [vmem:[%s219 + $0x8] sm:$0xff]
        %v260 = vld [vmem:[%s2] sm:$0xf]
        %vm261 = vcmask 130048
        %v263 = vsel %vm261, %v258, 0
        %v266 = vsel %vm261, %v259, 0
        %268 = vmatprep.subr.mxu0 0.0
        %269 = vmatpush1.msra.mxu0 0.0
        %270 = vmatprep.subr.mxu0 0.0
        %271 = vmatpush1.msra.mxu0 0.0
        %272 = vmatprep.subr.mxu0 0.0
        %273 = vmatpush1.msra.mxu0 0.0
        %274 = vmatprep.subr.mxu0 0.0
        %275 = vmatpush1.msra.mxu0 0.0
        %276 = vmatprep.subr.mxu0 0.0
        %277 = vmatpush1.msra.mxu0 0.0
        %278 = vmatprep.subr.mxu0 0.0
        %279 = vmatpush1.msra.mxu0 0.0
        %280 = vmatprep.subr.mxu0 0.0
        %281 = vmatpush1.msra.mxu0 0.0
        %282 = vmatprep.subr.mxu0 0.0
        %283 = vmatpush1.msra.mxu0 0.0
        %284 = vmatprep.subr.mxu0 0.0
        %285 = vmatpush1.msra.mxu0 0.0
        %286 = vmatprep.subr.mxu0 0.0
        %287 = vmatpush1.msra.mxu0 0.0
        %288 = vmatprep.subr.mxu0 0.0
        %289 = vmatpush1.msra.mxu0 0.0
        %290 = vmatprep.subr.mxu0 0.0
        %291 = vmatpush1.msra.mxu0 0.0
        %292 = vmatprep.subr.mxu0 0.0
        %293 = vmatpush1.msra.mxu0 0.0
        %294 = vmatprep.subr.mxu0 0.0
        %295 = vmatpush1.msra.mxu0 0.0
        %296 = vmatprep.subr.mxu0 0.0
        %297 = vmatpush1.msra.mxu0 %v257
        %298 = vmatprep.subr.mxu0 0.0
        %299 = vmatpush1.msra.mxu0 %v256
        %300 = vmatprep.subr.mxu0 0.0
        %301 = vmatpush2.msra.mxu0 0.0
        %302 = vmatprep.subr.mxu0 0.0
        %303 = vmatpush2.msra.mxu0 0.0
        %304 = vmatprep.subr.mxu0 0.0
        %305 = vmatpush2.msra.mxu0 0.0
        %306 = vmatprep.subr.mxu0 0.0
        %307 = vmatpush2.msra.mxu0 0.0
        %308 = vmatprep.subr.mxu0 0.0
        %309 = vmatpush2.msra.mxu0 0.0
        %310 = vmatprep.subr.mxu0 0.0
        %311 = vmatpush2.msra.mxu0 0.0
        %312 = vmatprep.subr.mxu0 0.0
        %313 = vmatpush2.msra.mxu0 0.0
        %314 = vmatprep.subr.mxu0 0.0
        %315 = vmatpush2.msra.mxu0 0.0
        %316 = vmatprep.subr.mxu0 0.0
        %317 = vmatpush2.msra.mxu0 0.0
        %318 = vmatprep.subr.mxu0 0.0
        %319 = vmatpush2.msra.mxu0 0.0
        %320 = vmatprep.subr.mxu0 0.0
        %321 = vmatpush2.msra.mxu0 0.0
        %322 = vmatprep.subr.mxu0 0.0
        %323 = vmatpush2.msra.mxu0 0.0
        %324 = vmatprep.subr.mxu0 0.0
        %325 = vmatpush2.msra.mxu0 0.0
        %326 = vmatprep.subr.mxu0 0.0
        %327 = vmatpush2.msra.mxu0 0.0
        %328 = vmatprep.subr.mxu0 0.0
        %329 = vmatpush2.msra.mxu0 0.0
        %330 = vmatprep.subr.mxu0 0.0
        %331 = vmatpush2.msra.mxu0 0.0
        %332 = vmatprep.mubr.f32.mxu0 0.0
        %333 = vmatmul.mubr.f32.gmra.mxu0 %v263
        %v334 = vpop.f32.mrf.mxu0
        %v335 = vadd.f32 0.0, %v334
        %v336 = vpop.f32.mrf.mxu0
        %337 = vmatprep.mubr.f32.mxu0 0.0
        %338 = vmatmul.mubr.f32.gmra.mxu0 %v266
        %v339 = vpop.f32.mrf.mxu0
        %v340 = vadd.f32 0.0, %v339
        %v341 = vpop.f32.mrf.mxu0
        %342 = vdwg.mxu0
        %s343 = scalar_lea.vmem %s219, 16 [#allocation2]
        %v344 = vld [vmem:[%s343] sm:$0xff]
        %v345 = vld [vmem:[%s343 + $0x8] sm:$0xff]
        %s346 = scalar_lea.vmem %s2, 4
        %v347 = vld [vmem:[%s346] sm:$0xf]
        %v349 = vsel %vm261, %v344, 0
        %v352 = vsel %vm261, %v345, 0
        %354 = vmatprep.subr.mxu0 0.0
        %355 = vmatpush1.msra.mxu0 0.0
        %356 = vmatprep.subr.mxu0 0.0
        %357 = vmatpush1.msra.mxu0 0.0
        %358 = vmatprep.subr.mxu0 0.0
        %359 = vmatpush1.msra.mxu0 0.0
        %360 = vmatprep.subr.mxu0 0.0
        %361 = vmatpush1.msra.mxu0 0.0
        %362 = vmatprep.subr.mxu0 0.0
        %363 = vmatpush1.msra.mxu0 0.0
        %364 = vmatprep.subr.mxu0 0.0
        %365 = vmatpush1.msra.mxu0 0.0
        %366 = vmatprep.subr.mxu0 0.0
        %367 = vmatpush1.msra.mxu0 0.0
        %368 = vmatprep.subr.mxu0 0.0
        %369 = vmatpush1.msra.mxu0 0.0
        %370 = vmatprep.subr.mxu0 0.0
        %371 = vmatpush1.msra.mxu0 0.0
        %372 = vmatprep.subr.mxu0 0.0
        %373 = vmatpush1.msra.mxu0 0.0
        %374 = vmatprep.subr.mxu0 0.0
        %375 = vmatpush1.msra.mxu0 0.0
        %376 = vmatprep.subr.mxu0 0.0
        %377 = vmatpush1.msra.mxu0 0.0
        %378 = vmatprep.subr.mxu0 0.0
        %379 = vmatpush1.msra.mxu0 0.0
        %380 = vmatprep.subr.mxu0 0.0
        %381 = vmatpush1.msra.mxu0 0.0
        %382 = vmatprep.subr.mxu0 0.0
        %383 = vmatpush1.msra.mxu0 %v257
        %384 = vmatprep.subr.mxu0 0.0
        %385 = vmatpush1.msra.mxu0 %v256
        %386 = vmatprep.subr.mxu0 0.0
        %387 = vmatpush2.msra.mxu0 0.0
        %388 = vmatprep.subr.mxu0 0.0
        %389 = vmatpush2.msra.mxu0 0.0
        %390 = vmatprep.subr.mxu0 0.0
        %391 = vmatpush2.msra.mxu0 0.0
        %392 = vmatprep.subr.mxu0 0.0
        %393 = vmatpush2.msra.mxu0 0.0
        %394 = vmatprep.subr.mxu0 0.0
        %395 = vmatpush2.msra.mxu0 0.0
        %396 = vmatprep.subr.mxu0 0.0
        %397 = vmatpush2.msra.mxu0 0.0
        %398 = vmatprep.subr.mxu0 0.0
        %399 = vmatpush2.msra.mxu0 0.0
        %400 = vmatprep.subr.mxu0 0.0
        %401 = vmatpush2.msra.mxu0 0.0
        %402 = vmatprep.subr.mxu0 0.0
        %403 = vmatpush2.msra.mxu0 0.0
        %404 = vmatprep.subr.mxu0 0.0
        %405 = vmatpush2.msra.mxu0 0.0
        %406 = vmatprep.subr.mxu0 0.0
        %407 = vmatpush2.msra.mxu0 0.0
        %408 = vmatprep.subr.mxu0 0.0
        %409 = vmatpush2.msra.mxu0 0.0
        %410 = vmatprep.subr.mxu0 0.0
        %411 = vmatpush2.msra.mxu0 0.0
        %412 = vmatprep.subr.mxu0 0.0
        %413 = vmatpush2.msra.mxu0 0.0
        %414 = vmatprep.subr.mxu0 0.0
        %415 = vmatpush2.msra.mxu0 0.0
        %416 = vmatprep.subr.mxu0 0.0
        %417 = vmatpush2.msra.mxu0 0.0
        %418 = vmatprep.mubr.f32.mxu0 0.0
        %419 = vmatmul.mubr.f32.gmra.mxu0 %v349
        %v420 = vpop.f32.mrf.mxu0
        %v421 = vadd.f32 0.0, %v420
        %v422 = vpop.f32.mrf.mxu0
        %423 = vmatprep.mubr.f32.mxu0 0.0
        %424 = vmatmul.mubr.f32.gmra.mxu0 %v352
        %v425 = vpop.f32.mrf.mxu0
        %v426 = vadd.f32 0.0, %v425
        %v427 = vpop.f32.mrf.mxu0
        %428 = vdwg.mxu0
        %vm429 = vcmask 31744
        %v431 = vsel %vm429, %v421, 0
        %v434 = vsel %vm429, %v426, 0
        %vm436 = vcmask 1043456
        %v438 = vsel %vm436, %v347, 0
        %440 = vmatprep.subr.mxu0 0.0
        %441 = vmatpush1.msra.mxu0 0.0
        %442 = vmatprep.subr.mxu0 0.0
        %443 = vmatpush1.msra.mxu0 0.0
        %444 = vmatprep.subr.mxu0 0.0
        %445 = vmatpush1.msra.mxu0 0.0
        %446 = vmatprep.subr.mxu0 0.0
        %447 = vmatpush1.msra.mxu0 0.0
        %448 = vmatprep.subr.mxu0 0.0
        %449 = vmatpush1.msra.mxu0 0.0
        %450 = vmatprep.subr.mxu0 0.0
        %451 = vmatpush1.msra.mxu0 0.0
        %452 = vmatprep.subr.mxu0 0.0
        %453 = vmatpush1.msra.mxu0 0.0
        %454 = vmatprep.subr.mxu0 0.0
        %455 = vmatpush1.msra.mxu0 0.0
        %456 = vmatprep.subr.mxu0 0.0
        %457 = vmatpush1.msra.mxu0 0.0
        %458 = vmatprep.subr.mxu0 0.0
        %459 = vmatpush1.msra.mxu0 0.0
        %460 = vmatprep.subr.mxu0 0.0
        %461 = vmatpush1.msra.mxu0 0.0
        %462 = vmatprep.subr.mxu0 0.0
        %463 = vmatpush1.msra.mxu0 0.0
        %464 = vmatprep.subr.mxu0 0.0
        %465 = vmatpush1.msra.mxu0 0.0
        %466 = vmatprep.subr.mxu0 0.0
        %467 = vmatpush1.msra.mxu0 0.0
        %468 = vmatprep.subr.mxu0 0.0
        %469 = vmatpush1.msra.mxu0 0.0
        %470 = vmatprep.subr.mxu0 0.0
        %471 = vmatpush1.msra.mxu0 %v438
        %472 = vmatprep.subr.mxu0 0.0
        %473 = vmatpush2.msra.mxu0 0.0
        %474 = vmatprep.subr.mxu0 0.0
        %475 = vmatpush2.msra.mxu0 0.0
        %476 = vmatprep.subr.mxu0 0.0
        %477 = vmatpush2.msra.mxu0 0.0
        %478 = vmatprep.subr.mxu0 0.0
        %479 = vmatpush2.msra.mxu0 0.0
        %480 = vmatprep.subr.mxu0 0.0
        %481 = vmatpush2.msra.mxu0 0.0
        %482 = vmatprep.subr.mxu0 0.0
        %483 = vmatpush2.msra.mxu0 0.0
        %484 = vmatprep.subr.mxu0 0.0
        %485 = vmatpush2.msra.mxu0 0.0
        %486 = vmatprep.subr.mxu0 0.0
        %487 = vmatpush2.msra.mxu0 0.0
        %488 = vmatprep.subr.mxu0 0.0
        %489 = vmatpush2.msra.mxu0 0.0
        %490 = vmatprep.subr.mxu0 0.0
        %491 = vmatpush2.msra.mxu0 0.0
        %492 = vmatprep.subr.mxu0 0.0
        %493 = vmatpush2.msra.mxu0 0.0
        %494 = vmatprep.subr.mxu0 0.0
        %495 = vmatpush2.msra.mxu0 0.0
        %496 = vmatprep.subr.mxu0 0.0
        %497 = vmatpush2.msra.mxu0 0.0
        %498 = vmatprep.subr.mxu0 0.0
        %499 = vmatpush2.msra.mxu0 0.0
        %500 = vmatprep.subr.mxu0 0.0
        %501 = vmatpush2.msra.mxu0 0.0
        %502 = vmatprep.subr.mxu0 0.0
        %503 = vmatpush2.msra.mxu0 0.0
        %504 = vmatprep.mubr.f32.mxu0 0.0
        %505 = vmatmul.mubr.f32.gmra.mxu0 %v431
        %v506 = vpop.f32.mrf.mxu0
        %v507 = vadd.f32 0.0, %v506
        %v508 = vpop.f32.mrf.mxu0
        %509 = vmatprep.mubr.f32.mxu0 0.0
        %510 = vmatmul.mubr.f32.gmra.mxu0 %v434
        %v511 = vpop.f32.mrf.mxu0
        %v512 = vadd.f32 0.0, %v511
        %v513 = vpop.f32.mrf.mxu0
        %514 = vdwg.mxu0
        %v516 = vsel %vm429, %v335, 0
        %v519 = vsel %vm429, %v340, 0
        %v522 = vsel %vm436, %v260, 0
        %524 = vmatprep.subr.mxu0 0.0
        %525 = vmatpush1.msra.mxu0 0.0
        %526 = vmatprep.subr.mxu0 0.0
        %527 = vmatpush1.msra.mxu0 0.0
        %528 = vmatprep.subr.mxu0 0.0
        %529 = vmatpush1.msra.mxu0 0.0
        %530 = vmatprep.subr.mxu0 0.0
        %531 = vmatpush1.msra.mxu0 0.0
        %532 = vmatprep.subr.mxu0 0.0
        %533 = vmatpush1.msra.mxu0 0.0
        %534 = vmatprep.subr.mxu0 0.0
        %535 = vmatpush1.msra.mxu0 0.0
        %536 = vmatprep.subr.mxu0 0.0
        %537 = vmatpush1.msra.mxu0 0.0
        %538 = vmatprep.subr.mxu0 0.0
        %539 = vmatpush1.msra.mxu0 0.0
        %540 = vmatprep.subr.mxu0 0.0
        %541 = vmatpush1.msra.mxu0 0.0
        %542 = vmatprep.subr.mxu0 0.0
        %543 = vmatpush1.msra.mxu0 0.0
        %544 = vmatprep.subr.mxu0 0.0
        %545 = vmatpush1.msra.mxu0 0.0
        %546 = vmatprep.subr.mxu0 0.0
        %547 = vmatpush1.msra.mxu0 0.0
        %548 = vmatprep.subr.mxu0 0.0
        %549 = vmatpush1.msra.mxu0 0.0
        %550 = vmatprep.subr.mxu0 0.0
        %551 = vmatpush1.msra.mxu0 0.0
        %552 = vmatprep.subr.mxu0 0.0
        %553 = vmatpush1.msra.mxu0 0.0
        %554 = vmatprep.subr.mxu0 0.0
        %555 = vmatpush1.msra.mxu0 %v522
        %556 = vmatprep.subr.mxu0 0.0
        %557 = vmatpush2.msra.mxu0 0.0
        %558 = vmatprep.subr.mxu0 0.0
        %559 = vmatpush2.msra.mxu0 0.0
        %560 = vmatprep.subr.mxu0 0.0
        %561 = vmatpush2.msra.mxu0 0.0
        %562 = vmatprep.subr.mxu0 0.0
        %563 = vmatpush2.msra.mxu0 0.0
        %564 = vmatprep.subr.mxu0 0.0
        %565 = vmatpush2.msra.mxu0 0.0
        %566 = vmatprep.subr.mxu0 0.0
        %567 = vmatpush2.msra.mxu0 0.0
        %568 = vmatprep.subr.mxu0 0.0
        %569 = vmatpush2.msra.mxu0 0.0
        %570 = vmatprep.subr.mxu0 0.0
        %571 = vmatpush2.msra.mxu0 0.0
        %572 = vmatprep.subr.mxu0 0.0
        %573 = vmatpush2.msra.mxu0 0.0
        %574 = vmatprep.subr.mxu0 0.0
        %575 = vmatpush2.msra.mxu0 0.0
        %576 = vmatprep.subr.mxu0 0.0
        %577 = vmatpush2.msra.mxu0 0.0
        %578 = vmatprep.subr.mxu0 0.0
        %579 = vmatpush2.msra.mxu0 0.0
        %580 = vmatprep.subr.mxu0 0.0
        %581 = vmatpush2.msra.mxu0 0.0
        %582 = vmatprep.subr.mxu0 0.0
        %583 = vmatpush2.msra.mxu0 0.0
        %584 = vmatprep.subr.mxu0 0.0
        %585 = vmatpush2.msra.mxu0 0.0
        %586 = vmatprep.subr.mxu0 0.0
        %587 = vmatpush2.msra.mxu0 0.0
        %588 = vmatprep.mubr.f32.mxu0 0.0
        %589 = vmatmul.mubr.f32.gmra.mxu0 %v516
        %v590 = vpop.f32.mrf.mxu0
        %v591 = vadd.f32 %v507, %v590
        %v592 = vpop.f32.mrf.mxu0
        %593 = vmatprep.mubr.f32.mxu0 0.0
        %594 = vmatmul.mubr.f32.gmra.mxu0 %v519
        %v595 = vpop.f32.mrf.mxu0
        %v596 = vadd.f32 %v512, %v595
        %v597 = vpop.f32.mrf.mxu0
        %598 = vdwg.mxu0
        %s599 = scalar_lea.vmem %s219, 32 [#allocation2]
        %v600 = vld [vmem:[%s599] sm:$0xff]
        %v601 = vld [vmem:[%s599 + $0x8] sm:$0xff]
        %s602 = scalar_lea.vmem %s2, 8
        %v603 = vld [vmem:[%s602] sm:$0xf]
        %v605 = vsel %vm261, %v600, 0
        %v608 = vsel %vm261, %v601, 0
        %610 = vmatprep.subr.mxu0 0.0
        %611 = vmatpush1.msra.mxu0 0.0
        %612 = vmatprep.subr.mxu0 0.0
        %613 = vmatpush1.msra.mxu0 0.0
        %614 = vmatprep.subr.mxu0 0.0
        %615 = vmatpush1.msra.mxu0 0.0
        %616 = vmatprep.subr.mxu0 0.0
        %617 = vmatpush1.msra.mxu0 0.0
        %618 = vmatprep.subr.mxu0 0.0
        %619 = vmatpush1.msra.mxu0 0.0
        %620 = vmatprep.subr.mxu0 0.0
        %621 = vmatpush1.msra.mxu0 0.0
        %622 = vmatprep.subr.mxu0 0.0
        %623 = vmatpush1.msra.mxu0 0.0
        %624 = vmatprep.subr.mxu0 0.0
        %625 = vmatpush1.msra.mxu0 0.0
        %626 = vmatprep.subr.mxu0 0.0
        %627 = vmatpush1.msra.mxu0 0.0
        %628 = vmatprep.subr.mxu0 0.0
        %629 = vmatpush1.msra.mxu0 0.0
        %630 = vmatprep.subr.mxu0 0.0
        %631 = vmatpush1.msra.mxu0 0.0
        %632 = vmatprep.subr.mxu0 0.0
        %633 = vmatpush1.msra.mxu0 0.0
        %634 = vmatprep.subr.mxu0 0.0
        %635 = vmatpush1.msra.mxu0 0.0
        %636 = vmatprep.subr.mxu0 0.0
        %637 = vmatpush1.msra.mxu0 0.0
        %638 = vmatprep.subr.mxu0 0.0
        %639 = vmatpush1.msra.mxu0 %v257
        %640 = vmatprep.subr.mxu0 0.0
        %641 = vmatpush1.msra.mxu0 %v256
        %642 = vmatprep.subr.mxu0 0.0
        %643 = vmatpush2.msra.mxu0 0.0
        %644 = vmatprep.subr.mxu0 0.0
        %645 = vmatpush2.msra.mxu0 0.0
        %646 = vmatprep.subr.mxu0 0.0
        %647 = vmatpush2.msra.mxu0 0.0
        %648 = vmatprep.subr.mxu0 0.0
        %649 = vmatpush2.msra.mxu0 0.0
        %650 = vmatprep.subr.mxu0 0.0
        %651 = vmatpush2.msra.mxu0 0.0
        %652 = vmatprep.subr.mxu0 0.0
        %653 = vmatpush2.msra.mxu0 0.0
        %654 = vmatprep.subr.mxu0 0.0
        %655 = vmatpush2.msra.mxu0 0.0
        %656 = vmatprep.subr.mxu0 0.0
        %657 = vmatpush2.msra.mxu0 0.0
        %658 = vmatprep.subr.mxu0 0.0
        %659 = vmatpush2.msra.mxu0 0.0
        %660 = vmatprep.subr.mxu0 0.0
        %661 = vmatpush2.msra.mxu0 0.0
        %662 = vmatprep.subr.mxu0 0.0
        %663 = vmatpush2.msra.mxu0 0.0
        %664 = vmatprep.subr.mxu0 0.0
        %665 = vmatpush2.msra.mxu0 0.0
        %666 = vmatprep.subr.mxu0 0.0
        %667 = vmatpush2.msra.mxu0 0.0
        %668 = vmatprep.subr.mxu0 0.0
        %669 = vmatpush2.msra.mxu0 0.0
        %670 = vmatprep.subr.mxu0 0.0
        %671 = vmatpush2.msra.mxu0 0.0
        %672 = vmatprep.subr.mxu0 0.0
        %673 = vmatpush2.msra.mxu0 0.0
        %674 = vmatprep.mubr.f32.mxu0 0.0
        %675 = vmatmul.mubr.f32.gmra.mxu0 %v605
        %v676 = vpop.f32.mrf.mxu0
        %v677 = vadd.f32 0.0, %v676
        %v678 = vpop.f32.mrf.mxu0
        %679 = vmatprep.mubr.f32.mxu0 0.0
        %680 = vmatmul.mubr.f32.gmra.mxu0 %v608
        %v681 = vpop.f32.mrf.mxu0
        %v682 = vadd.f32 0.0, %v681
        %v683 = vpop.f32.mrf.mxu0
        %684 = vdwg.mxu0
        %v686 = vsel %vm429, %v677, 0
        %v689 = vsel %vm429, %v682, 0
        %v692 = vsel %vm436, %v603, 0
        %694 = vmatprep.subr.mxu0 0.0
        %695 = vmatpush1.msra.mxu0 0.0
        %696 = vmatprep.subr.mxu0 0.0
        %697 = vmatpush1.msra.mxu0 0.0
        %698 = vmatprep.subr.mxu0 0.0
        %699 = vmatpush1.msra.mxu0 0.0
        %700 = vmatprep.subr.mxu0 0.0
        %701 = vmatpush1.msra.mxu0 0.0
        %702 = vmatprep.subr.mxu0 0.0
        %703 = vmatpush1.msra.mxu0 0.0
        %704 = vmatprep.subr.mxu0 0.0
        %705 = vmatpush1.msra.mxu0 0.0
        %706 = vmatprep.subr.mxu0 0.0
        %707 = vmatpush1.msra.mxu0 0.0
        %708 = vmatprep.subr.mxu0 0.0
        %709 = vmatpush1.msra.mxu0 0.0
        %710 = vmatprep.subr.mxu0 0.0
        %711 = vmatpush1.msra.mxu0 0.0
        %712 = vmatprep.subr.mxu0 0.0
        %713 = vmatpush1.msra.mxu0 0.0
        %714 = vmatprep.subr.mxu0 0.0
        %715 = vmatpush1.msra.mxu0 0.0
        %716 = vmatprep.subr.mxu0 0.0
        %717 = vmatpush1.msra.mxu0 0.0
        %718 = vmatprep.subr.mxu0 0.0
        %719 = vmatpush1.msra.mxu0 0.0
        %720 = vmatprep.subr.mxu0 0.0
        %721 = vmatpush1.msra.mxu0 0.0
        %722 = vmatprep.subr.mxu0 0.0
        %723 = vmatpush1.msra.mxu0 0.0
        %724 = vmatprep.subr.mxu0 0.0
        %725 = vmatpush1.msra.mxu0 %v692
        %726 = vmatprep.subr.mxu0 0.0
        %727 = vmatpush2.msra.mxu0 0.0
        %728 = vmatprep.subr.mxu0 0.0
        %729 = vmatpush2.msra.mxu0 0.0
        %730 = vmatprep.subr.mxu0 0.0
        %731 = vmatpush2.msra.mxu0 0.0
        %732 = vmatprep.subr.mxu0 0.0
        %733 = vmatpush2.msra.mxu0 0.0
        %734 = vmatprep.subr.mxu0 0.0
        %735 = vmatpush2.msra.mxu0 0.0
        %736 = vmatprep.subr.mxu0 0.0
        %737 = vmatpush2.msra.mxu0 0.0
        %738 = vmatprep.subr.mxu0 0.0
        %739 = vmatpush2.msra.mxu0 0.0
        %740 = vmatprep.subr.mxu0 0.0
        %741 = vmatpush2.msra.mxu0 0.0
        %742 = vmatprep.subr.mxu0 0.0
        %743 = vmatpush2.msra.mxu0 0.0
        %744 = vmatprep.subr.mxu0 0.0
        %745 = vmatpush2.msra.mxu0 0.0
        %746 = vmatprep.subr.mxu0 0.0
        %747 = vmatpush2.msra.mxu0 0.0
        %748 = vmatprep.subr.mxu0 0.0
        %749 = vmatpush2.msra.mxu0 0.0
        %750 = vmatprep.subr.mxu0 0.0
        %751 = vmatpush2.msra.mxu0 0.0
        %752 = vmatprep.subr.mxu0 0.0
        %753 = vmatpush2.msra.mxu0 0.0
        %754 = vmatprep.subr.mxu0 0.0
        %755 = vmatpush2.msra.mxu0 0.0
        %756 = vmatprep.subr.mxu0 0.0
        %757 = vmatpush2.msra.mxu0 0.0
        %758 = vmatprep.mubr.f32.mxu0 0.0
        %759 = vmatmul.mubr.f32.gmra.mxu0 %v686
        %v760 = vpop.f32.mrf.mxu0
        %v761 = vadd.f32 0.0, %v760
        %v762 = vpop.f32.mrf.mxu0
        %763 = vmatprep.mubr.f32.mxu0 0.0
        %764 = vmatmul.mubr.f32.gmra.mxu0 %v689
        %v765 = vpop.f32.mrf.mxu0
        %v766 = vadd.f32 0.0, %v765
        %v767 = vpop.f32.mrf.mxu0
        %768 = vdwg.mxu0
        %v769 = vadd.f32 %v591, %v761
        %v770 = vadd.f32 %v596, %v766
        %v771 = vld [vmem:[%s3] sm:$0x1]
        %v773 = vlaneseq
        %v774 = vshrl.u32 %v773, 7
        %v775 = vsub.s32 0, %v774
        %v776 = vrot.slane %v771, %v775
        %v778 = vadd.f32 %v769, %v776
        %v779 = vadd.f32 %v770, %v776
        %v780 = vmax.f32 %v778, 0.0
        %v781 = vmax.f32 %v779, 0.0
        %782 = vst [vmem:[%s248] sm:$0xff] %v780
        %783 = vst [vmem:[%s248 + $0x8] sm:$0xff] %v781
        %s784 = sand.u32 %s139, 1
        %s785 = scalar_lea.sflag [#allocation4], %s784
        %s786 = sand.u32 %s139, 1
        %s787 = smul.addr %s786, 16
        %s788 = scalar_lea.vmem [#allocation5], %s787
        // Predicated region
        $region41: #{tpu_custom_call.1} parent=35 // pred_check
          %p789 = pneg %p149
        $region42: #{tpu_custom_call.1} parent=35 // pred_check_branch
          %791 = sbr.rel (%p789) target = $region44
        $region43: #{tpu_custom_call.1} parent=35 // pred_region
          %s792 = smul.u32 2, %s26
          %s794 = ssub.s32 256, 256
          %795 = vsyncadd %s785, %s794
          %s796 = smul.addr %s25, 2
          %s797 = sadd.s32 %s792, %s796
          %s798 = smul.addr %s797, 128
          %s799 = scalar_lea.hbm %s4, %s798
          %s800 = sshll.u32 %s788, 4
          %s801 = int_to_ptr.vmem [resolvable:$true] %s800
          %806 = dma.vmem_to_hbm [thread:$0]  %s801, 256, %s799, %s785, 128, 128, 8
        $region44: #{tpu_custom_call.1} parent=35 // pred_fallthru
          _
      $region36: #{tpu_custom_call.1} parent=5 // pred_fallthru
        _
      %p807 = scmp.le.s32.totalorder 2, %s16
      // Predicated region
      $region45: #{tpu_custom_call.1} parent=5 // pred_check
        %p808 = pneg %p807
      $region46: #{tpu_custom_call.1} parent=5 // pred_check_branch
        %810 = sbr.rel (%p808) target = $region48
      $region47: #{tpu_custom_call.1} parent=5 // pred_region
        %s811 = ssub.s32 %s16, 2
        // Predicated region
        $region49: #{tpu_custom_call.1} parent=47 // pred_check
          %p812 = pneg %p155
        $region50: #{tpu_custom_call.1} parent=47 // pred_check_branch
          %814 = sbr.rel (%p812) target = $region52
        $region51: #{tpu_custom_call.1} parent=47 // pred_region
          %s815 = sand.u32 %s140, 1
          %s816 = scalar_lea.sflag [#allocation4], %s815
          %s817 = sand.u32 %s140, 1
          %s818 = smul.addr %s817, 16
          %s819 = scalar_lea.vmem [#allocation5], %s818
          %820 = dma.done %s816, 256
        $region52: #{tpu_custom_call.1} parent=47 // pred_fallthru
          _
      $region48: #{tpu_custom_call.1} parent=5 // pred_fallthru
        _
    $region6: #{tpu_custom_call.1} parent=1 // loop_footer
      %s20 = sadd.s32 1, %s16
    $region7: #{tpu_custom_call.1} parent=1 // loop_footer_branch
      %15 = sbr.rel target = $region3
    $region8: #{tpu_custom_call.1} parent=1 // loop_exit
      _
    %821 = vsyncpa [#allocation3], 1
    %s822 = scalar_lea.sflag [#allocation3], 1
    %823 = vsyncpa %s822, 1
    %824 = vsyncpa [#allocation4], 1
    %s825 = scalar_lea.sflag [#allocation4], 1
    %826 = vsyncpa %s825, 1

</llo_original>
